<compile_context>
chip_gen: v5e
topology: v5e:2x2
jax: 0.10.0
libtpu: 0.0.40
codegen_flags: <defaults>
</compile_context>

<pallas_src>
import jax
import jax.numpy as jnp
from jax.experimental import pallas as pl
from jax.experimental.pallas import tpu as pltpu

LANES = 128
_TARGET_BLOCK_BYTES = 2 * 1024 * 1024  # ~2 MiB per block (roofline plateau)


def _h_swish_kernel(x_ref, o_ref):
    x = x_ref[...]
    # h_sigmoid(x) = relu6(x + 3) / 6 ; h_swish(x) = x * h_sigmoid(x)
    hs = jnp.clip(x + 3.0, 0.0, 6.0) * (1.0 / 6.0)
    o_ref[...] = (x * hs).astype(o_ref.dtype)


def _sublane_pack(dtype) -> int:
    # Native sublane packing: f32 -> 8 rows, bf16/f16 -> 16, int8/fp8 -> 32.
    itemsize = jnp.dtype(dtype).itemsize
    return {4: 8, 2: 16, 1: 32}.get(itemsize, 8)


def h_swish(x: jax.Array) -> jax.Array:
    """Elementwise h_swish matching the PyTorch module, any shape/float dtype."""
    orig_shape = x.shape
    dtype = x.dtype
    n = x.size
    if n == 0:
        return x

    flat = x.reshape(-1)  # contiguous reshape: free

    # Ragged tail only when the total element count isn't lane-aligned.
    # Typical NCHW activation shapes are multiples of 128, so this is rare.
    n_pad = (-n) % LANES
    if n_pad:
        # TODO(synk): this rare path copies the tensor once; a fully copy-free
        # ragged tail would need a 1D / manual-DMA kernel.
        flat = jnp.pad(flat, (0, n_pad))  # h_swish(0) == 0, so padding is safe

    rows = flat.shape[0] // LANES
    x2d = flat.reshape(rows, LANES)

    pack = _sublane_pack(dtype)
    itemsize = jnp.dtype(dtype).itemsize
    # Largest row-tile that keeps each block ~2 MiB, aligned to sublane packing.
    max_rows = max(pack, (_TARGET_BLOCK_BYTES // (LANES * itemsize)) // pack * pack)

    if rows <= 2 * pack:
        # Tiny slab: a single full-extent block is always a legal block shape.
        tile_rows = rows
    else:
        # Prefer >= 2 grid steps (v7x megacore) while capping block bytes.
        tile_rows = min(max_rows, pl.cdiv(rows, 2))
        tile_rows = max(pack, (tile_rows // pack) * pack)

    grid = (pl.cdiv(rows, tile_rows),)

    # Advisory cost hint for XLA's scheduler around the custom call.
    cost = pl.CostEstimate(
        flops=5 * rows * LANES,
        transcendentals=0,
        bytes_accessed=2 * rows * LANES * itemsize,
    )

    out2d = pl.pallas_call(
        _h_swish_kernel,
        out_shape=jax.ShapeDtypeStruct((rows, LANES), dtype),
        grid=grid,
        in_specs=[pl.BlockSpec((tile_rows, LANES), lambda i: (i, 0))],
        out_specs=pl.BlockSpec((tile_rows, LANES), lambda i: (i, 0)),
        compiler_params=pltpu.CompilerParams(
            dimension_semantics=("parallel",)
        ),
        cost_estimate=cost,
    )(x2d)

    out_flat = out2d.reshape(-1)
    if n_pad:
        out_flat = out_flat[:n]
    return out_flat.reshape(orig_shape)


def _h_swish_ref(x: jax.Array) -> jax.Array:
    return x * (jnp.clip(x + 3.0, 0.0, 6.0) / 6.0)


if __name__ == "__main__":
    key = jax.random.PRNGKey(0)

    # NCHW, matching the PyTorch convention (batch=2, channels=4, spatial=16).
    x = jax.random.normal(key, (2, 4, 16, 16), dtype=jnp.float32) * 4.0
    out = jax.block_until_ready(h_swish(x))
    ref = _h_swish_ref(x)
    assert out.shape == x.shape and out.dtype == x.dtype
    assert jnp.allclose(out, ref, atol=1e-6, rtol=1e-6)

    # Lane-misaligned element count (exercises the rare padded path).
    x2 = jax.random.normal(jax.random.PRNGKey(1), (2, 4, 20, 20), dtype=jnp.float32) * 4.0
    out2 = jax.block_until_ready(h_swish(x2))
    assert jnp.allclose(out2, _h_swish_ref(x2), atol=1e-6, rtol=1e-6)

    # bf16 path (16-row sublane packing, partial last block).
    x3 = (jax.random.normal(jax.random.PRNGKey(2), (3, 8, 24, 16)) * 4.0).astype(jnp.bfloat16)
    out3 = jax.block_until_ready(h_swish(x3))
    assert out3.dtype == jnp.bfloat16 and out3.shape == x3.shape
    assert jnp.allclose(out3.astype(jnp.float32),
                        _h_swish_ref(x3).astype(jnp.float32), atol=3e-2, rtol=3e-2)

    print("KERNEL_OK")
</pallas_src>

<mosaic_0001>
module attributes {stable_mosaic.version = 11 : i64} {
  func.func @_h_swish_kernel(%arg0: i32, %arg1: memref<16x128xf32, #tpu.memory_space<vmem>>, %arg2: memref<16x128xf32, #tpu.memory_space<vmem>>) attributes {dimension_semantics = [#tpu.dimension_semantics<parallel>], iteration_bounds = array<i64: 1>, scalar_prefetch = 0 : i64, scratch_operands = 0 : i64, tpu.core_type = #tpu.core_type<tc>, window_params = [{transform_indices = @transform_0, window_bounds = array<i64: 16, 128>}, {transform_indices = @transform_1, window_bounds = array<i64: 16, 128>}]} {
    %c0 = arith.constant 0 : index
    %c0_0 = arith.constant 0 : index
    %0 = vector.load %arg1[%c0, %c0_0] : memref<16x128xf32, #tpu.memory_space<vmem>>, vector<16x128xf32>
    %cst = arith.constant 3.000000e+00 : f32
    %1 = vector.broadcast %cst : f32 to vector<16x128xf32>
    %2 = arith.addf %0, %1 : vector<16x128xf32>
    %cst_1 = arith.constant 0.000000e+00 : f32
    %cst_2 = arith.constant 6.000000e+00 : f32
    %3 = vector.broadcast %cst_1 : f32 to vector<16x128xf32>
    %4 = arith.maximumf %3, %2 : vector<16x128xf32>
    %5 = vector.broadcast %cst_2 : f32 to vector<16x128xf32>
    %6 = arith.minimumf %5, %4 : vector<16x128xf32>
    %cst_3 = arith.constant 0.166666672 : f32
    %7 = vector.broadcast %cst_3 : f32 to vector<16x128xf32>
    %8 = arith.mulf %6, %7 : vector<16x128xf32>
    %9 = arith.mulf %0, %8 : vector<16x128xf32>
    %c0_4 = arith.constant 0 : index
    %c0_5 = arith.constant 0 : index
    %10 = vector.load %arg2[%c0_4, %c0_5] : memref<16x128xf32, #tpu.memory_space<vmem>>, vector<16x128xf32>
    tpu.vector_store %arg2[%c0_4, %c0_5], %9 {strides = array<i32>} : memref<16x128xf32, #tpu.memory_space<vmem>>, vector<16x128xf32>,
    return
  }
  func.func @transform_0(%arg0: i32) -> (i32, i32) {
    %c0_i32 = arith.constant 0 : i32
    %c0_i32_0 = arith.constant 0 : i32
    return %arg0, %c0_i32 : i32, i32
  }
  func.func @transform_1(%arg0: i32) -> (i32, i32) {
    %c0_i32 = arith.constant 0 : i32
    %c0_i32_0 = arith.constant 0 : i32
    return %arg0, %c0_i32 : i32, i32
  }
}

</mosaic_0001>

<llo_original>
// kernel: tpu_custom_call.1
$region0: #{tpu_custom_call.1}
  #allocation0 [shape = 'u32[]', space=smem, size = 0x4, offset = 0x4, fixed_abs, tag = 'smem constant byte address 0x4 - core index']
  #allocation1 [shape = 'u32[72,128]{1,0:T(1,128)}', space=vmem, size = 0x9000, scoped, tag = 'internal scratch']
  %s0 = inlined_call_operand.hbm [shape: f32[16,128], index: 0, kind: input, shape index: {}]
  %s1 = inlined_call_operand.hbm [shape: f32[16,128], index: 1, kind: output, shape index: {}]
  %s2 = sld [smem:[#allocation0]]
  $region18: #{tpu_custom_call.1} parent=0
    _
  %s4 = ssub.s32 1, %s2
  %s5 = scalar_select 0, %s4, %s2
  $region1: #{tpu_custom_call.1} parent=0
    #allocation2 [shape = 'u8[8192]{0}', space=vmem, size = 0x2000, scoped, tag = 'input window, operand 0, single buffered']
    #allocation3 [shape = 's32[1]{0}', space=sflag, size = 0x4, scoped, tag = 'scoped memory for tpu_custom_call.1']
    #allocation4 [shape = 's32[1]{0}', space=sflag, size = 0x4, scoped, tag = 'scoped memory for tpu_custom_call.1']
    #allocation5 [shape = 'u8[8192]{0}', space=vmem, size = 0x2000, scoped, tag = 'output window, operand 0, single buffered']
    %6 = vsyncpa [#allocation3], 0
    %7 = vsyncpa [#allocation4], 0
    // Predicated region
    $region2: #{tpu_custom_call.1} parent=1 // pred_check
      _
    $region3: #{tpu_custom_call.1} parent=1 // pred_check_branch
      %9 = sbr.rel (0) target = $region5
    $region4: #{tpu_custom_call.1} parent=1 // pred_region
      %11 = vsyncadd [#allocation3], 0
      %s12 = sshll.u32 %s0, 4
      %s13 = int_to_ptr.hbm [resolvable:$true] %s12
      %s14 = sshll.u32 [#allocation2], 4
      %s15 = int_to_ptr.vmem [resolvable:$true] %s14
      %20 = dma.hbm_to_vmem [thread:$0]  %s13, 256, %s15, [#allocation3], 128, 128, 8
    $region5: #{tpu_custom_call.1} parent=1 // pred_fallthru
      _
    // Predicated region
    $region6: #{tpu_custom_call.1} parent=1 // pred_check
      _
    $region7: #{tpu_custom_call.1} parent=1 // pred_check_branch
      %22 = sbr.rel (0) target = $region9
    $region8: #{tpu_custom_call.1} parent=1 // pred_region
      %24 = dma.done [#allocation3], 256
    $region9: #{tpu_custom_call.1} parent=1 // pred_fallthru
      _
    %v25 = vld [vmem:[#allocation2] sm:$0xff]
    %v26 = vld [vmem:[#allocation2 + $0x8] sm:$0xff]
    %v27 = vadd.f32 %v25, 3.0
    %v28 = vadd.f32 %v26, 3.0
    %v29 = vmax.f32 %v27, 0.0
    %v30 = vmax.f32 %v28, 0.0
    %v31 = vmin.f32 %v29, 6.0
    %v32 = vmin.f32 %v30, 6.0
    %v33 = vmul.f32 %v31, 0.16666667
    %v34 = vmul.f32 %v32, 0.16666667
    %v35 = vmul.f32 %v25, %v33
    %v36 = vmul.f32 %v26, %v34
    %37 = vst [vmem:[#allocation5] sm:$0xff] %v35
    %38 = vst [vmem:[#allocation5 + $0x8] sm:$0xff] %v36
    // Predicated region
    $region10: #{tpu_custom_call.1} parent=1 // pred_check
      _
    $region11: #{tpu_custom_call.1} parent=1 // pred_check_branch
      %40 = sbr.rel (0) target = $region13
    $region12: #{tpu_custom_call.1} parent=1 // pred_region
      %42 = vsyncadd [#allocation4], 0
      %s43 = sshll.u32 [#allocation5], 4
      %s44 = int_to_ptr.vmem [resolvable:$true] %s43
      %s45 = sshll.u32 %s1, 4
      %s46 = int_to_ptr.hbm [resolvable:$true] %s45
      %51 = dma.vmem_to_hbm [thread:$0]  %s44, 256, %s46, [#allocation4], 128, 128, 8
    $region13: #{tpu_custom_call.1} parent=1 // pred_fallthru
      _
    // Predicated region
    $region14: #{tpu_custom_call.1} parent=1 // pred_check
      _
    $region15: #{tpu_custom_call.1} parent=1 // pred_check_branch
      %53 = sbr.rel (0) target = $region17
    $region16: #{tpu_custom_call.1} parent=1 // pred_region
      %55 = dma.done [#allocation4], 256
    $region17: #{tpu_custom_call.1} parent=1 // pred_fallthru
      _
    %56 = vsyncpa [#allocation3], 1
    %57 = vsyncpa [#allocation4], 1

</llo_original>
